<compile_context>
chip_gen: v6e
topology: v6e:2x2x1
jax: 0.10.0
libtpu: 0.0.40
codegen_flags: <defaults>
</compile_context>

<pallas_src>
import math

import jax
import jax.numpy as jnp
from jax.experimental import pallas as pl
from jax.experimental.pallas import tpu as pltpu

LANES = 128  # hidden dim (64) is zero-padded up to a full lane width


def _round_up(n, m):
    return (n + m - 1) // m * m


def _value_mlp_kernel(x_ref, w1_ref, b1_ref, w2_ref, b2_ref, w3_ref, b3_ref, o_ref):
    """One batch tile of the critic MLP.

    x_ref  : (TB, S)   f32 activations (cast to the weight dtype in-kernel)
    w1_ref : (S, 128)  layer-1 weight, hidden zero-padded 64 -> 128 (bf16 or f32)
    b1_ref : (1, 128)  f32
    w2_ref : (128, 128) (bf16 or f32)
    b2_ref : (1, 128)  f32
    w3_ref : (1, 128)  f32  final layer stored as a row (no N=1 MXU matmul)
    b3_ref : (1,)      f32  scalar bias in SMEM
    o_ref  : (1, TB)   f32  lane-dense output row
    """
    # In-kernel cast (VPU) keeps x in its native f32 in HBM -> minimal HBM traffic.
    x = x_ref[...].astype(w1_ref.dtype)

    # Layer 1 (MXU), f32 accumulate, f32 bias + tanh (EUP).
    h1 = jnp.tanh(
        jnp.dot(x, w1_ref[...], preferred_element_type=jnp.float32) + b1_ref[...]
    )

    # Layer 2 (MXU): feed operands back in the weight dtype (bf16 fast path on
    # v6e/v7x); bias add + tanh stay in f32 (v5e has no bf16 VPU/EUP).
    h2 = jnp.tanh(
        jnp.dot(h1.astype(w2_ref.dtype), w2_ref[...],
                preferred_element_type=jnp.float32) + b2_ref[...]
    )

    # Layer 3: N=1 matmul wastes an MXU push; use VPU multiply + cross-lane
    # reduce (XLU slot, otherwise idle here) producing a lane-dense row.
    v = jnp.sum(h2 * w3_ref[...], axis=-1) + b3_ref[0]     # (TB,)
    o_ref[0, :] = v.astype(o_ref.dtype)


def value_forward(x, packed_params, *, block_b=2048):
    """Value MLP forward. x: (B, state_dim) f32 -> (B,) f32."""
    w1, b1, w2, b2, w3, b3 = packed_params
    B, S = x.shape

    # Batch tile: multiple of 128 so the lane-dense output block is unmasked and the
    # x sublane dim is aligned.  TB=2048 keeps double-buffered x tiles tiny relative to
    # scoped VMEM on all generations while amortizing the ~0.35us per-grid-step overhead.
    TB = min(_round_up(block_b, LANES), _round_up(B, LANES))
    grid = (pl.cdiv(B, TB),)

    out = pl.pallas_call(
        _value_mlp_kernel,
        out_shape=jax.ShapeDtypeStruct((1, B), jnp.float32),
        grid=grid,
        in_specs=[
            pl.BlockSpec((TB, S), lambda i: (i, 0)),             # x: tiled over batch
            pl.BlockSpec(w1.shape, lambda i: (0, 0)),            # weights stay resident
            pl.BlockSpec(b1.shape, lambda i: (0, 0)),
            pl.BlockSpec(w2.shape, lambda i: (0, 0)),
            pl.BlockSpec(b2.shape, lambda i: (0, 0)),
            pl.BlockSpec(w3.shape, lambda i: (0, 0)),
            pl.BlockSpec(memory_space=pltpu.MemorySpace.SMEM),   # scalar b3
        ],
        out_specs=pl.BlockSpec((1, TB), lambda i: (0, i)),        # lane-dense output row
        compiler_params=pltpu.CompilerParams(
            dimension_semantics=("parallel",)),                   # megacore split on v7x
    )(x, w1, b1, w2, b2, w3, b3)

    return out[0]  # == .squeeze(1)


def _orthogonal(key, shape, gain):
    """torch.nn.init.orthogonal_ semantics for a Linear weight of logical shape
    (out_f, in_f); returned transposed to our (in_f, out_f) layout."""
    in_f, out_f = shape
    rows, cols = out_f, in_f
    flat = jax.random.normal(key, (rows, cols), dtype=jnp.float32)
    if rows < cols:
        flat = flat.T
    q, r = jnp.linalg.qr(flat)
    q = q * jnp.sign(jnp.diag(r))[None, :]
    if rows < cols:
        q = q.T
    return (gain * q).T.astype(jnp.float32)  # (in_f, out_f)


def init_value_params(key, state_dim, hidden=64):
    """Unpadded 'logical' params, matching the PyTorch module's layer_init."""
    k1, k2, k3 = jax.random.split(key, 3)
    g = math.sqrt(2.0)
    w1 = _orthogonal(k1, (state_dim, hidden), g)
    b1 = jnp.zeros((hidden,), jnp.float32)
    w2 = _orthogonal(k2, (hidden, hidden), g)
    b2 = jnp.zeros((hidden,), jnp.float32)
    w3 = _orthogonal(k3, (hidden, 1), g)
    b3 = jnp.zeros((1,), jnp.float32)
    return (w1, b1, w2, b2, w3, b3)


def pack_value_params(params, *, compute_dtype=jnp.bfloat16, lanes=LANES):
    """Zero-pad the hidden dim to a full 128-lane width once, at init time, and cast the
    MXU weights to the compute dtype once (no per-call wrapper casts).
    Numerically identical: tanh(0)=0 and the padded rows/cols of the next layer's
    weights are zero, so padded lanes never contribute."""
    w1, b1, w2, b2, w3, b3 = params
    S, H = w1.shape
    f32 = jnp.float32
    w1p = jnp.zeros((S, lanes), f32).at[:, :H].set(w1).astype(compute_dtype)
    b1p = jnp.zeros((1, lanes), f32).at[0, :H].set(b1)
    w2p = jnp.zeros((lanes, lanes), f32).at[:H, :H].set(w2).astype(compute_dtype)
    b2p = jnp.zeros((1, lanes), f32).at[0, :H].set(b2)
    w3p = jnp.zeros((1, lanes), f32).at[0, :H].set(w3[:, 0])   # final layer row, kept f32 (VPU)
    b3p = jnp.asarray(b3, f32).reshape((1,))
    return (w1p, b1p, w2p, b2p, w3p, b3p)


if __name__ == "__main__":
    key = jax.random.PRNGKey(0)
    kx, kp = jax.random.split(key)

    batch, state_dim = 8, 32
    x = jax.random.normal(kx, (batch, state_dim), dtype=jnp.float32)
    raw = init_value_params(kp, state_dim)

    # Pure-JAX reference of the PyTorch module's math (unpadded weights).
    w1, b1, w2, b2, w3, b3 = raw
    ref = jnp.tanh(x @ w1 + b1)
    ref = jnp.tanh(ref @ w2 + b2)
    ref = (ref @ w3)[:, 0] + b3[0]

    # f32 operand path: should match the reference tightly.
    params_f32 = pack_value_params(raw, compute_dtype=jnp.float32)
    out_f32 = jax.block_until_ready(value_forward(x, params_f32))
    assert out_f32.shape == (batch,)
    assert jnp.allclose(out_f32, ref, atol=1e-4, rtol=1e-4)

    # bf16 operand path (v6e/v7x MXU fast path, f32 accumulation): looser tolerance.
    params_bf16 = pack_value_params(raw, compute_dtype=jnp.bfloat16)
    out_bf16 = jax.block_until_ready(value_forward(x, params_bf16))
    assert out_bf16.shape == (batch,)
    assert jnp.allclose(out_bf16, ref, atol=5e-2, rtol=5e-2)

    print("KERNEL_OK")
</pallas_src>

<mosaic_0001>
module attributes {stable_mosaic.version = 11 : i64} {
  func.func @_value_mlp_kernel(%arg0: i32, %arg1: memref<128x32xf32, #tpu.memory_space<vmem>>, %arg2: memref<32x128xf32, #tpu.memory_space<vmem>>, %arg3: memref<1x128xf32, #tpu.memory_space<vmem>>, %arg4: memref<128x128xf32, #tpu.memory_space<vmem>>, %arg5: memref<1x128xf32, #tpu.memory_space<vmem>>, %arg6: memref<1x128xf32, #tpu.memory_space<vmem>>, %arg7: memref<1xf32, #tpu.memory_space<smem>>, %arg8: memref<1x128xf32, #tpu.memory_space<vmem>>) attributes {dimension_semantics = [#tpu.dimension_semantics<parallel>], iteration_bounds = array<i64: 1>, scalar_prefetch = 0 : i64, scratch_operands = 0 : i64, tpu.core_type = #tpu.core_type<tc>, window_params = [{transform_indices = @transform_0, window_bounds = array<i64: 128, 32>}, {pipeline_mode = #tpu.pipeline_mode<synchronous>, transform_indices = @transform_1, window_bounds = array<i64: 32, 128>}, {pipeline_mode = #tpu.pipeline_mode<synchronous>, transform_indices = @transform_2, window_bounds = array<i64: 1, 128>}, {pipeline_mode = #tpu.pipeline_mode<synchronous>, transform_indices = @transform_3, window_bounds = array<i64: 128, 128>}, {pipeline_mode = #tpu.pipeline_mode<synchronous>, transform_indices = @transform_4, window_bounds = array<i64: 1, 128>}, {pipeline_mode = #tpu.pipeline_mode<synchronous>, transform_indices = @transform_5, window_bounds = array<i64: 1, 128>}, {transform_indices = @transform_6, window_bounds = array<i64: 1>}, {transform_indices = @transform_7, window_bounds = array<i64: 1, 128>}]} {
    %c0 = arith.constant 0 : index
    %c0_0 = arith.constant 0 : index
    %0 = vector.load %arg1[%c0, %c0_0] : memref<128x32xf32, #tpu.memory_space<vmem>>, vector<128x32xf32>
    %c0_1 = arith.constant 0 : index
    %c0_2 = arith.constant 0 : index
    %1 = vector.load %arg2[%c0_1, %c0_2] : memref<32x128xf32, #tpu.memory_space<vmem>>, vector<32x128xf32>
    %cst = arith.constant dense<0.000000e+00> : vector<128x128xf32>
    %2 = tpu.matmul %0, %1, %cst {dimension_numbers = #tpu.dot_dimension_numbers<[1], [0], [0], [1], [0, 0, 1, 1], [], []>} : vector<128x32xf32>, vector<32x128xf32>, vector<128x128xf32> -> vector<128x128xf32>
    %c0_3 = arith.constant 0 : index
    %c0_4 = arith.constant 0 : index
    %3 = vector.load %arg3[%c0_3, %c0_4] : memref<1x128xf32, #tpu.memory_space<vmem>>, vector<1x128xf32>
    %4 = vector.broadcast %3 : vector<1x128xf32> to vector<128x128xf32>
    %5 = arith.addf %2, %4 : vector<128x128xf32>
    %6 = math.tanh %5 : vector<128x128xf32>
    %c0_5 = arith.constant 0 : index
    %c0_6 = arith.constant 0 : index
    %7 = vector.load %arg4[%c0_5, %c0_6] : memref<128x128xf32, #tpu.memory_space<vmem>>, vector<128x128xf32>
    %cst_7 = arith.constant dense<0.000000e+00> : vector<128x128xf32>
    %8 = tpu.matmul %6, %7, %cst_7 {dimension_numbers = #tpu.dot_dimension_numbers<[1], [0], [0], [1], [0, 0, 1, 1], [], []>} : vector<128x128xf32>, vector<128x128xf32>, vector<128x128xf32> -> vector<128x128xf32>
    %c0_8 = arith.constant 0 : index
    %c0_9 = arith.constant 0 : index
    %9 = vector.load %arg5[%c0_8, %c0_9] : memref<1x128xf32, #tpu.memory_space<vmem>>, vector<1x128xf32>
    %10 = vector.broadcast %9 : vector<1x128xf32> to vector<128x128xf32>
    %11 = arith.addf %8, %10 : vector<128x128xf32>
    %12 = math.tanh %11 : vector<128x128xf32>
    %c0_10 = arith.constant 0 : index
    %c0_11 = arith.constant 0 : index
    %13 = vector.load %arg6[%c0_10, %c0_11] : memref<1x128xf32, #tpu.memory_space<vmem>>, vector<1x128xf32>
    %14 = vector.broadcast %13 : vector<1x128xf32> to vector<128x128xf32>
    %15 = arith.mulf %12, %14 : vector<128x128xf32>
    %cst_12 = arith.constant dense<0.000000e+00> : vector<128xf32>
    %16 = vector.multi_reduction <add>, %15, %cst_12 [1] : vector<128x128xf32> to vector<128xf32>
    %c0_13 = arith.constant 0 : index
    %17 = memref.load %arg7[%c0_13] : memref<1xf32, #tpu.memory_space<smem>>
    %18 = vector.broadcast %17 : f32 to vector<128xf32>
    %19 = arith.addf %16, %18 : vector<128xf32>
    %c0_14 = arith.constant 0 : index
    %c0_15 = arith.constant 0 : index
    %20 = vector.load %arg8[%c0_14, %c0_15] : memref<1x128xf32, #tpu.memory_space<vmem>>, vector<1x128xf32>
    %21 = vector.shape_cast %20 : vector<1x128xf32> to vector<128xf32>
    %22 = vector.shape_cast %19 : vector<128xf32> to vector<1x128xf32>
    tpu.vector_store %arg8[%c0_14, %c0_15], %22 {strides = array<i32>} : memref<1x128xf32, #tpu.memory_space<vmem>>, vector<1x128xf32>,
    return
  }
  func.func @transform_0(%arg0: i32) -> (i32, i32) {
    %c0_i32 = arith.constant 0 : i32
    %c0_i32_0 = arith.constant 0 : i32
    return %arg0, %c0_i32 : i32, i32
  }
  func.func @transform_1(%arg0: i32) -> (i32, i32) {
    %c0_i32 = arith.constant 0 : i32
    %c0_i32_0 = arith.constant 0 : i32
    %c0_i32_1 = arith.constant 0 : i32
    return %c0_i32, %c0_i32_0 : i32, i32
  }
  func.func @transform_2(%arg0: i32) -> (i32, i32) {
    %c0_i32 = arith.constant 0 : i32
    %c0_i32_0 = arith.constant 0 : i32
    %c0_i32_1 = arith.constant 0 : i32
    return %c0_i32, %c0_i32_0 : i32, i32
  }
  func.func @transform_3(%arg0: i32) -> (i32, i32) {
    %c0_i32 = arith.constant 0 : i32
    %c0_i32_0 = arith.constant 0 : i32
    %c0_i32_1 = arith.constant 0 : i32
    return %c0_i32, %c0_i32_0 : i32, i32
  }
  func.func @transform_4(%arg0: i32) -> (i32, i32) {
    %c0_i32 = arith.constant 0 : i32
    %c0_i32_0 = arith.constant 0 : i32
    %c0_i32_1 = arith.constant 0 : i32
    return %c0_i32, %c0_i32_0 : i32, i32
  }
  func.func @transform_5(%arg0: i32) -> (i32, i32) {
    %c0_i32 = arith.constant 0 : i32
    %c0_i32_0 = arith.constant 0 : i32
    %c0_i32_1 = arith.constant 0 : i32
    return %c0_i32, %c0_i32_0 : i32, i32
  }
  func.func @transform_6(%arg0: i32) -> i32 {
    %c0_i32 = arith.constant 0 : i32
    %c0_i32_0 = arith.constant 0 : i32
    return %c0_i32 : i32
  }
  func.func @transform_7(%arg0: i32) -> (i32, i32) {
    %c0_i32 = arith.constant 0 : i32
    %c0_i32_0 = arith.constant 0 : i32
    return %c0_i32, %arg0 : i32, i32
  }
}

</mosaic_0001>

<llo_original>
// kernel: tpu_custom_call.1
$region0: #{tpu_custom_call.1}
  #allocation0 [shape = 'u32[]', space=smem, size = 0x4, offset = 0x4, fixed_abs, tag = 'smem constant byte address 0x4 - core index']
  #allocation1 [shape = 'u32[144,128]{1,0:T(1,128)}', space=vmem, size = 0x12000, scoped, tag = 'internal scratch']
  #allocation2 [shape = 'f32[1]{0:T(128)S(6)}', space=smem, size = 0x200, scoped, tag = 'scoped memory for tpu_custom_call.1']
  %s0 = inlined_call_operand.hbm [shape: f32[8,32], index: 0, kind: input, shape index: {}]
  %s1 = inlined_call_operand.hbm [shape: f32[32,128], index: 1, kind: input, shape index: {}]
  %s2 = inlined_call_operand.vmem [shape: f32[1,128], index: 2, kind: input, shape index: {}]
  %s3 = inlined_call_operand.hbm [shape: f32[128,128], index: 3, kind: input, shape index: {}]
  %s4 = inlined_call_operand.vmem [shape: f32[1,128], index: 4, kind: input, shape index: {}]
  %s5 = inlined_call_operand.vmem [shape: f32[1,128], index: 5, kind: input, shape index: {}]
  %s6 = inlined_call_operand.<no memory space> [shape: f32[1], index: 6, kind: input, shape index: {}]
  %s7 = inlined_call_operand.hbm [shape: f32[1,8], index: 7, kind: output, shape index: {}]
  %s8 = sld [smem:[#allocation0]]
  $region50: #{tpu_custom_call.1} parent=0
    _
  %s10 = ssub.s32 1, %s8
  %s11 = scalar_select 0, %s10, %s8
  %12 = sst [smem:[#allocation2]] %s6
  $region1: #{tpu_custom_call.1} parent=0
    #allocation3 [shape = 'u8[65536]{0}', space=vmem, size = 0x10000, scoped, tag = 'input window, operand 0, single buffered']
    #allocation4 [shape = 's32[1]{0}', space=sflag, size = 0x4, scoped, tag = 'scoped memory for tpu_custom_call.1']
    #allocation5 [shape = 's32[1]{0}', space=sflag, size = 0x4, scoped, tag = 'scoped memory for tpu_custom_call.1']
    #allocation6 [shape = 'u8[16384]{0}', space=vmem, size = 0x4000, scoped, tag = 'input window, operand 1, single buffered']
    #allocation7 [shape = 's32[1]{0}', space=sflag, size = 0x4, scoped, tag = 'scoped memory for tpu_custom_call.1']
    #allocation8 [shape = 'u8[65536]{0}', space=vmem, size = 0x10000, scoped, tag = 'input window, operand 3, single buffered']
    #allocation9 [shape = 'u8[512]{0}', space=vmem, size = 0x400, scoped, tag = 'output window, operand 0, single buffered']
    %13 = vsyncpa [#allocation4], 0
    %14 = vsyncpa [#allocation7], 0
    %15 = vsyncpa [#allocation5], 0
    // Predicated region
    $region2: #{tpu_custom_call.1} parent=1 // pred_check
      _
    $region3: #{tpu_custom_call.1} parent=1 // pred_check_branch
      %17 = sbr.rel (0) target = $region5
    $region4: #{tpu_custom_call.1} parent=1 // pred_region
      %s19 = ssub.s32 2048, 128
      %20 = vsyncadd [#allocation4], %s19
      %s21 = sshll.u32 [#allocation3], 4
      %s22 = int_to_ptr.vmem [resolvable:$true] %s21
      %27 = dma.hbm_to_vmem [thread:$0]  %s0, 128, %s22, [#allocation4], 128, 128, 8
    $region5: #{tpu_custom_call.1} parent=1 // pred_fallthru
      _
    // Predicated region
    $region6: #{tpu_custom_call.1} parent=1 // pred_check
      _
    $region7: #{tpu_custom_call.1} parent=1 // pred_check_branch
      %29 = sbr.rel (0) target = $region9
    $region8: #{tpu_custom_call.1} parent=1 // pred_region
      %s31 = ssub.s32 512, 512
      %32 = vsyncadd [#allocation7], %s31
      %s33 = sshll.u32 [#allocation6], 4
      %s34 = int_to_ptr.vmem [resolvable:$true] %s33
      %39 = dma.hbm_to_vmem [thread:$0]  %s1, 512, %s34, [#allocation7], 128, 128, 8
    $region9: #{tpu_custom_call.1} parent=1 // pred_fallthru
      _
    // Predicated region
    $region10: #{tpu_custom_call.1} parent=1 // pred_check
      _
    $region11: #{tpu_custom_call.1} parent=1 // pred_check_branch
      %41 = sbr.rel (0) target = $region13
    $region12: #{tpu_custom_call.1} parent=1 // pred_region
      _
    $region13: #{tpu_custom_call.1} parent=1 // pred_fallthru
      _
    // Predicated region
    $region14: #{tpu_custom_call.1} parent=1 // pred_check
      _
    $region15: #{tpu_custom_call.1} parent=1 // pred_check_branch
      %43 = sbr.rel (0) target = $region17
    $region16: #{tpu_custom_call.1} parent=1 // pred_region
      %s45 = ssub.s32 2048, 2048
      %46 = vsyncadd [#allocation7], %s45
      %s47 = sshll.u32 [#allocation8], 4
      %s48 = int_to_ptr.vmem [resolvable:$true] %s47
      %53 = dma.hbm_to_vmem [thread:$0]  %s3, 2048, %s48, [#allocation7], 128, 128, 8
    $region17: #{tpu_custom_call.1} parent=1 // pred_fallthru
      _
    // Predicated region
    $region18: #{tpu_custom_call.1} parent=1 // pred_check
      _
    $region19: #{tpu_custom_call.1} parent=1 // pred_check_branch
      %55 = sbr.rel (0) target = $region21
    $region20: #{tpu_custom_call.1} parent=1 // pred_region
      _
    $region21: #{tpu_custom_call.1} parent=1 // pred_fallthru
      _
    // Predicated region
    $region22: #{tpu_custom_call.1} parent=1 // pred_check
      _
    $region23: #{tpu_custom_call.1} parent=1 // pred_check_branch
      %57 = sbr.rel (0) target = $region25
    $region24: #{tpu_custom_call.1} parent=1 // pred_region
      _
    $region25: #{tpu_custom_call.1} parent=1 // pred_fallthru
      _
    // Predicated region
    $region26: #{tpu_custom_call.1} parent=1 // pred_check
      _
    $region27: #{tpu_custom_call.1} parent=1 // pred_check_branch
      %59 = sbr.rel (0) target = $region29
    $region28: #{tpu_custom_call.1} parent=1 // pred_region
      _
    $region29: #{tpu_custom_call.1} parent=1 // pred_fallthru
      _
    // Predicated region
    $region30: #{tpu_custom_call.1} parent=1 // pred_check
      _
    $region31: #{tpu_custom_call.1} parent=1 // pred_check_branch
      %61 = sbr.rel (0) target = $region33
    $region32: #{tpu_custom_call.1} parent=1 // pred_region
      %62 = dma.done [#allocation4], 2048
    $region33: #{tpu_custom_call.1} parent=1 // pred_fallthru
      _
    // Predicated region
    $region34: #{tpu_custom_call.1} parent=1 // pred_check
      _
    $region35: #{tpu_custom_call.1} parent=1 // pred_check_branch
      %64 = sbr.rel (0) target = $region37
    $region36: #{tpu_custom_call.1} parent=1 // pred_region
      %65 = dma.done [#allocation7], 512
    $region37: #{tpu_custom_call.1} parent=1 // pred_fallthru
      _
    // Predicated region
    $region38: #{tpu_custom_call.1} parent=1 // pred_check
      _
    $region39: #{tpu_custom_call.1} parent=1 // pred_check_branch
      %67 = sbr.rel (0) target = $region41
    $region40: #{tpu_custom_call.1} parent=1 // pred_region
      %68 = dma.done [#allocation7], 2048
    $region41: #{tpu_custom_call.1} parent=1 // pred_fallthru
      _
    %v69 = vld [vmem:[#allocation3] sm:$0xff]
    %v70 = vld [vmem:[#allocation3 + $0x8] sm:$0xff]
    %v71 = vld [vmem:[#allocation3 + $0x10] sm:$0xff]
    %v72 = vld [vmem:[#allocation3 + $0x18] sm:$0xff]
    %v73 = vld [vmem:[#allocation3 + $0x20] sm:$0xff]
    %v74 = vld [vmem:[#allocation3 + $0x28] sm:$0xff]
    %v75 = vld [vmem:[#allocation3 + $0x30] sm:$0xff]
    %v76 = vld [vmem:[#allocation3 + $0x38] sm:$0xff]
    %v77 = vld [vmem:[#allocation3 + $0x40] sm:$0xff]
    %v78 = vld [vmem:[#allocation3 + $0x48] sm:$0xff]
    %v79 = vld [vmem:[#allocation3 + $0x50] sm:$0xff]
    %v80 = vld [vmem:[#allocation3 + $0x58] sm:$0xff]
    %v81 = vld [vmem:[#allocation3 + $0x60] sm:$0xff]
    %v82 = vld [vmem:[#allocation3 + $0x68] sm:$0xff]
    %v83 = vld [vmem:[#allocation3 + $0x70] sm:$0xff]
    %v84 = vld [vmem:[#allocation3 + $0x78] sm:$0xff]
    %v85 = vld [vmem:[#allocation6] sm:$0xff]
    %v86 = vld [vmem:[#allocation6 + $0x8] sm:$0xff]
    %v87 = vld [vmem:[#allocation6 + $0x10] sm:$0xff]
    %v88 = vld [vmem:[#allocation6 + $0x18] sm:$0xff]
    %v89 = vld [vmem:[%s2] sm:$0x1]
    %v91 = vlaneseq
    %v92 = vshrl.u32 %v91, 7
    %v93 = vsub.s32 0, %v92
    %v94 = vrot.slane %v89, %v93
    %vm96 = vcmask 261120
    %v98 = vsel %vm96, %v69, 0
    %v101 = vsel %vm96, %v70, 0
    %v104 = vsel %vm96, %v71, 0
    %v107 = vsel %vm96, %v72, 0
    %v110 = vsel %vm96, %v73, 0
    %v113 = vsel %vm96, %v74, 0
    %v116 = vsel %vm96, %v75, 0
    %v119 = vsel %vm96, %v76, 0
    %v122 = vsel %vm96, %v77, 0
    %v125 = vsel %vm96, %v78, 0
    %v128 = vsel %vm96, %v79, 0
    %v131 = vsel %vm96, %v80, 0
    %v134 = vsel %vm96, %v81, 0
    %v137 = vsel %vm96, %v82, 0
    %v140 = vsel %vm96, %v83, 0
    %v143 = vsel %vm96, %v84, 0
    %145 = vmatprep.subr.mxu0 0.0
    %146 = vmatpush1.msra.mxu0 0.0
    %147 = vmatprep.subr.mxu0 0.0
    %148 = vmatpush1.msra.mxu0 0.0
    %149 = vmatprep.subr.mxu0 0.0
    %150 = vmatpush1.msra.mxu0 0.0
    %151 = vmatprep.subr.mxu0 0.0
    %152 = vmatpush1.msra.mxu0 0.0
    %153 = vmatprep.subr.mxu0 0.0
    %154 = vmatpush1.msra.mxu0 0.0
    %155 = vmatprep.subr.mxu0 0.0
    %156 = vmatpush1.msra.mxu0 0.0
    %157 = vmatprep.subr.mxu0 0.0
    %158 = vmatpush1.msra.mxu0 0.0
    %159 = vmatprep.subr.mxu0 0.0
    %160 = vmatpush1.msra.mxu0 0.0
    %161 = vmatprep.subr.mxu0 0.0
    %162 = vmatpush1.msra.mxu0 0.0
    %163 = vmatprep.subr.mxu0 0.0
    %164 = vmatpush1.msra.mxu0 0.0
    %165 = vmatprep.subr.mxu0 0.0
    %166 = vmatpush1.msra.mxu0 0.0
    %167 = vmatprep.subr.mxu0 0.0
    %168 = vmatpush1.msra.mxu0 0.0
    %169 = vmatprep.subr.mxu0 0.0
    %170 = vmatpush1.msra.mxu0 %v88
    %171 = vmatprep.subr.mxu0 0.0
    %172 = vmatpush1.msra.mxu0 %v87
    %173 = vmatprep.subr.mxu0 0.0
    %174 = vmatpush1.msra.mxu0 %v86
    %175 = vmatprep.subr.mxu0 0.0
    %176 = vmatpush1.msra.mxu0 %v85
    %177 = vmatprep.subr.mxu0 0.0
    %178 = vmatpush2.msra.mxu0 0.0
    %179 = vmatprep.subr.mxu0 0.0
    %180 = vmatpush2.msra.mxu0 0.0
    %181 = vmatprep.subr.mxu0 0.0
    %182 = vmatpush2.msra.mxu0 0.0
    %183 = vmatprep.subr.mxu0 0.0
    %184 = vmatpush2.msra.mxu0 0.0
    %185 = vmatprep.subr.mxu0 0.0
    %186 = vmatpush2.msra.mxu0 0.0
    %187 = vmatprep.subr.mxu0 0.0
    %188 = vmatpush2.msra.mxu0 0.0
    %189 = vmatprep.subr.mxu0 0.0
    %190 = vmatpush2.msra.mxu0 0.0
    %191 = vmatprep.subr.mxu0 0.0
    %192 = vmatpush2.msra.mxu0 0.0
    %193 = vmatprep.subr.mxu0 0.0
    %194 = vmatpush2.msra.mxu0 0.0
    %195 = vmatprep.subr.mxu0 0.0
    %196 = vmatpush2.msra.mxu0 0.0
    %197 = vmatprep.subr.mxu0 0.0
    %198 = vmatpush2.msra.mxu0 0.0
    %199 = vmatprep.subr.mxu0 0.0
    %200 = vmatpush2.msra.mxu0 0.0
    %201 = vmatprep.subr.mxu0 0.0
    %202 = vmatpush2.msra.mxu0 0.0
    %203 = vmatprep.subr.mxu0 0.0
    %204 = vmatpush2.msra.mxu0 0.0
    %205 = vmatprep.subr.mxu0 0.0
    %206 = vmatpush2.msra.mxu0 0.0
    %207 = vmatprep.subr.mxu0 0.0
    %208 = vmatpush2.msra.mxu0 0.0
    %209 = vmatprep.mubr.f32.mxu0 0.0
    %210 = vmatmul.mubr.f32.gmra.mxu0 %v98
    %v211 = vpop.f32.mrf.mxu0
    %v212 = vadd.f32 %v94, %v211
    %v213 = vpop.f32.mrf.mxu0
    %214 = vmatprep.mubr.f32.mxu0 0.0
    %215 = vmatmul.mubr.f32.gmra.mxu0 %v101
    %v216 = vpop.f32.mrf.mxu0
    %v217 = vadd.f32 %v94, %v216
    %v218 = vpop.f32.mrf.mxu0
    %219 = vmatprep.mubr.f32.mxu0 0.0
    %220 = vmatmul.mubr.f32.gmra.mxu0 %v104
    %v221 = vpop.f32.mrf.mxu0
    %v222 = vadd.f32 %v94, %v221
    %v223 = vpop.f32.mrf.mxu0
    %224 = vmatprep.mubr.f32.mxu0 0.0
    %225 = vmatmul.mubr.f32.gmra.mxu0 %v107
    %v226 = vpop.f32.mrf.mxu0
    %v227 = vadd.f32 %v94, %v226
    %v228 = vpop.f32.mrf.mxu0
    %229 = vmatprep.mubr.f32.mxu0 0.0
    %230 = vmatmul.mubr.f32.gmra.mxu0 %v110
    %v231 = vpop.f32.mrf.mxu0
    %v232 = vadd.f32 %v94, %v231
    %v233 = vpop.f32.mrf.mxu0
    %234 = vmatprep.mubr.f32.mxu0 0.0
    %235 = vmatmul.mubr.f32.gmra.mxu0 %v113
    %v236 = vpop.f32.mrf.mxu0
    %v237 = vadd.f32 %v94, %v236
    %v238 = vpop.f32.mrf.mxu0
    %239 = vmatprep.mubr.f32.mxu0 0.0
    %240 = vmatmul.mubr.f32.gmra.mxu0 %v116
    %v241 = vpop.f32.mrf.mxu0
    %v242 = vadd.f32 %v94, %v241
    %v243 = vpop.f32.mrf.mxu0
    %244 = vmatprep.mubr.f32.mxu0 0.0
    %245 = vmatmul.mubr.f32.gmra.mxu0 %v119
    %v246 = vpop.f32.mrf.mxu0
    %v247 = vadd.f32 %v94, %v246
    %v248 = vpop.f32.mrf.mxu0
    %249 = vmatprep.mubr.f32.mxu0 0.0
    %250 = vmatmul.mubr.f32.gmra.mxu0 %v122
    %v251 = vpop.f32.mrf.mxu0
    %v252 = vadd.f32 %v94, %v251
    %v253 = vpop.f32.mrf.mxu0
    %254 = vmatprep.mubr.f32.mxu0 0.0
    %255 = vmatmul.mubr.f32.gmra.mxu0 %v125
    %v256 = vpop.f32.mrf.mxu0
    %v257 = vadd.f32 %v94, %v256
    %v258 = vpop.f32.mrf.mxu0
    %259 = vmatprep.mubr.f32.mxu0 0.0
    %260 = vmatmul.mubr.f32.gmra.mxu0 %v128
    %v261 = vpop.f32.mrf.mxu0
    %v262 = vadd.f32 %v94, %v261
    %v263 = vpop.f32.mrf.mxu0
    %264 = vmatprep.mubr.f32.mxu0 0.0
    %265 = vmatmul.mubr.f32.gmra.mxu0 %v131
    %v266 = vpop.f32.mrf.mxu0
    %v267 = vadd.f32 %v94, %v266
    %v268 = vpop.f32.mrf.mxu0
    %269 = vmatprep.mubr.f32.mxu0 0.0
    %270 = vmatmul.mubr.f32.gmra.mxu0 %v134
    %v271 = vpop.f32.mrf.mxu0
    %v272 = vadd.f32 %v94, %v271
    %v273 = vpop.f32.mrf.mxu0
    %274 = vmatprep.mubr.f32.mxu0 0.0
    %275 = vmatmul.mubr.f32.gmra.mxu0 %v137
    %v276 = vpop.f32.mrf.mxu0
    %v277 = vadd.f32 %v94, %v276
    %v278 = vpop.f32.mrf.mxu0
    %279 = vmatprep.mubr.f32.mxu0 0.0
    %280 = vmatmul.mubr.f32.gmra.mxu0 %v140
    %v281 = vpop.f32.mrf.mxu0
    %v282 = vadd.f32 %v94, %v281
    %v283 = vpop.f32.mrf.mxu0
    %284 = vmatprep.mubr.f32.mxu0 0.0
    %285 = vmatmul.mubr.f32.gmra.mxu0 %v143
    %v286 = vpop.f32.mrf.mxu0
    %v287 = vadd.f32 %v94, %v286
    %v288 = vpop.f32.mrf.mxu0
    %289 = vdwg.mxu0
    %v290 = vtanh.pop %v212
    %v291 = vtanh.pop %v217
    %v292 = vtanh.pop %v222
    %v293 = vtanh.pop %v227
    %v294 = vtanh.pop %v232
    %v295 = vtanh.pop %v237
    %v296 = vtanh.pop %v242
    %v297 = vtanh.pop %v247
    %v298 = vtanh.pop %v252
    %v299 = vtanh.pop %v257
    %v300 = vtanh.pop %v262
    %v301 = vtanh.pop %v267
    %v302 = vtanh.pop %v272
    %v303 = vtanh.pop %v277
    %v304 = vtanh.pop %v282
    %v305 = vtanh.pop %v287
    %v306 = vld [vmem:[#allocation8] sm:$0xff]
    %v307 = vld [vmem:[#allocation8 + $0x8] sm:$0xff]
    %v308 = vld [vmem:[#allocation8 + $0x10] sm:$0xff]
    %v309 = vld [vmem:[#allocation8 + $0x18] sm:$0xff]
    %v310 = vld [vmem:[#allocation8 + $0x20] sm:$0xff]
    %v311 = vld [vmem:[#allocation8 + $0x28] sm:$0xff]
    %v312 = vld [vmem:[#allocation8 + $0x30] sm:$0xff]
    %v313 = vld [vmem:[#allocation8 + $0x38] sm:$0xff]
    %v314 = vld [vmem:[#allocation8 + $0x40] sm:$0xff]
    %v315 = vld [vmem:[#allocation8 + $0x48] sm:$0xff]
    %v316 = vld [vmem:[#allocation8 + $0x50] sm:$0xff]
    %v317 = vld [vmem:[#allocation8 + $0x58] sm:$0xff]
    %v318 = vld [vmem:[#allocation8 + $0x60] sm:$0xff]
    %v319 = vld [vmem:[#allocation8 + $0x68] sm:$0xff]
    %v320 = vld [vmem:[#allocation8 + $0x70] sm:$0xff]
    %v321 = vld [vmem:[#allocation8 + $0x78] sm:$0xff]
    %v322 = vld [vmem:[%s4] sm:$0x1]
    %v324 = vlaneseq
    %v325 = vshrl.u32 %v324, 7
    %v326 = vsub.s32 0, %v325
    %v327 = vrot.slane %v322, %v326
    %329 = vmatprep.subr.mxu0 0.0
    %330 = vmatpush1.msra.mxu0 %v321
    %331 = vmatprep.subr.mxu0 0.0
    %332 = vmatpush1.msra.mxu0 %v320
    %333 = vmatprep.subr.mxu0 0.0
    %334 = vmatpush1.msra.mxu0 %v319
    %335 = vmatprep.subr.mxu0 0.0
    %336 = vmatpush1.msra.mxu0 %v318
    %337 = vmatprep.subr.mxu0 0.0
    %338 = vmatpush1.msra.mxu0 %v317
    %339 = vmatprep.subr.mxu0 0.0
    %340 = vmatpush1.msra.mxu0 %v316
    %341 = vmatprep.subr.mxu0 0.0
    %342 = vmatpush1.msra.mxu0 %v315
    %343 = vmatprep.subr.mxu0 0.0
    %344 = vmatpush1.msra.mxu0 %v314
    %345 = vmatprep.subr.mxu0 0.0
    %346 = vmatpush1.msra.mxu0 %v313
    %347 = vmatprep.subr.mxu0 0.0
    %348 = vmatpush1.msra.mxu0 %v312
    %349 = vmatprep.subr.mxu0 0.0
    %350 = vmatpush1.msra.mxu0 %v311
    %351 = vmatprep.subr.mxu0 0.0
    %352 = vmatpush1.msra.mxu0 %v310
    %353 = vmatprep.subr.mxu0 0.0
    %354 = vmatpush1.msra.mxu0 %v309
    %355 = vmatprep.subr.mxu0 0.0
    %356 = vmatpush1.msra.mxu0 %v308
    %357 = vmatprep.subr.mxu0 0.0
    %358 = vmatpush1.msra.mxu0 %v307
    %359 = vmatprep.subr.mxu0 0.0
    %360 = vmatpush1.msra.mxu0 %v306
    %361 = vmatprep.subr.mxu0 0.0
    %362 = vmatpush2.msra.mxu0 0.0
    %363 = vmatprep.subr.mxu0 0.0
    %364 = vmatpush2.msra.mxu0 0.0
    %365 = vmatprep.subr.mxu0 0.0
    %366 = vmatpush2.msra.mxu0 0.0
    %367 = vmatprep.subr.mxu0 0.0
    %368 = vmatpush2.msra.mxu0 0.0
    %369 = vmatprep.subr.mxu0 0.0
    %370 = vmatpush2.msra.mxu0 0.0
    %371 = vmatprep.subr.mxu0 0.0
    %372 = vmatpush2.msra.mxu0 0.0
    %373 = vmatprep.subr.mxu0 0.0
    %374 = vmatpush2.msra.mxu0 0.0
    %375 = vmatprep.subr.mxu0 0.0
    %376 = vmatpush2.msra.mxu0 0.0
    %377 = vmatprep.subr.mxu0 0.0
    %378 = vmatpush2.msra.mxu0 0.0
    %379 = vmatprep.subr.mxu0 0.0
    %380 = vmatpush2.msra.mxu0 0.0
    %381 = vmatprep.subr.mxu0 0.0
    %382 = vmatpush2.msra.mxu0 0.0
    %383 = vmatprep.subr.mxu0 0.0
    %384 = vmatpush2.msra.mxu0 0.0
    %385 = vmatprep.subr.mxu0 0.0
    %386 = vmatpush2.msra.mxu0 0.0
    %387 = vmatprep.subr.mxu0 0.0
    %388 = vmatpush2.msra.mxu0 0.0
    %389 = vmatprep.subr.mxu0 0.0
    %390 = vmatpush2.msra.mxu0 0.0
    %391 = vmatprep.subr.mxu0 0.0
    %392 = vmatpush2.msra.mxu0 0.0
    %393 = vmatprep.mubr.f32.mxu0 0.0
    %394 = vmatmul.mubr.f32.gmra.mxu0 %v290
    %v395 = vpop.f32.mrf.mxu0
    %v396 = vadd.f32 %v327, %v395
    %v397 = vpop.f32.mrf.mxu0
    %398 = vmatprep.mubr.f32.mxu0 0.0
    %399 = vmatmul.mubr.f32.gmra.mxu0 %v291
    %v400 = vpop.f32.mrf.mxu0
    %v401 = vadd.f32 %v327, %v400
    %v402 = vpop.f32.mrf.mxu0
    %403 = vmatprep.mubr.f32.mxu0 0.0
    %404 = vmatmul.mubr.f32.gmra.mxu0 %v292
    %v405 = vpop.f32.mrf.mxu0
    %v406 = vadd.f32 %v327, %v405
    %v407 = vpop.f32.mrf.mxu0
    %408 = vmatprep.mubr.f32.mxu0 0.0
    %409 = vmatmul.mubr.f32.gmra.mxu0 %v293
    %v410 = vpop.f32.mrf.mxu0
    %v411 = vadd.f32 %v327, %v410
    %v412 = vpop.f32.mrf.mxu0
    %413 = vmatprep.mubr.f32.mxu0 0.0
    %414 = vmatmul.mubr.f32.gmra.mxu0 %v294
    %v415 = vpop.f32.mrf.mxu0
    %v416 = vadd.f32 %v327, %v415
    %v417 = vpop.f32.mrf.mxu0
    %418 = vmatprep.mubr.f32.mxu0 0.0
    %419 = vmatmul.mubr.f32.gmra.mxu0 %v295
    %v420 = vpop.f32.mrf.mxu0
    %v421 = vadd.f32 %v327, %v420
    %v422 = vpop.f32.mrf.mxu0
    %423 = vmatprep.mubr.f32.mxu0 0.0
    %424 = vmatmul.mubr.f32.gmra.mxu0 %v296
    %v425 = vpop.f32.mrf.mxu0
    %v426 = vadd.f32 %v327, %v425
    %v427 = vpop.f32.mrf.mxu0
    %428 = vmatprep.mubr.f32.mxu0 0.0
    %429 = vmatmul.mubr.f32.gmra.mxu0 %v297
    %v430 = vpop.f32.mrf.mxu0
    %v431 = vadd.f32 %v327, %v430
    %v432 = vpop.f32.mrf.mxu0
    %433 = vmatprep.mubr.f32.mxu0 0.0
    %434 = vmatmul.mubr.f32.gmra.mxu0 %v298
    %v435 = vpop.f32.mrf.mxu0
    %v436 = vadd.f32 %v327, %v435
    %v437 = vpop.f32.mrf.mxu0
    %438 = vmatprep.mubr.f32.mxu0 0.0
    %439 = vmatmul.mubr.f32.gmra.mxu0 %v299
    %v440 = vpop.f32.mrf.mxu0
    %v441 = vadd.f32 %v327, %v440
    %v442 = vpop.f32.mrf.mxu0
    %443 = vmatprep.mubr.f32.mxu0 0.0
    %444 = vmatmul.mubr.f32.gmra.mxu0 %v300
    %v445 = vpop.f32.mrf.mxu0
    %v446 = vadd.f32 %v327, %v445
    %v447 = vpop.f32.mrf.mxu0
    %448 = vmatprep.mubr.f32.mxu0 0.0
    %449 = vmatmul.mubr.f32.gmra.mxu0 %v301
    %v450 = vpop.f32.mrf.mxu0
    %v451 = vadd.f32 %v327, %v450
    %v452 = vpop.f32.mrf.mxu0
    %453 = vmatprep.mubr.f32.mxu0 0.0
    %454 = vmatmul.mubr.f32.gmra.mxu0 %v302
    %v455 = vpop.f32.mrf.mxu0
    %v456 = vadd.f32 %v327, %v455
    %v457 = vpop.f32.mrf.mxu0
    %458 = vmatprep.mubr.f32.mxu0 0.0
    %459 = vmatmul.mubr.f32.gmra.mxu0 %v303
    %v460 = vpop.f32.mrf.mxu0
    %v461 = vadd.f32 %v327, %v460
    %v462 = vpop.f32.mrf.mxu0
    %463 = vmatprep.mubr.f32.mxu0 0.0
    %464 = vmatmul.mubr.f32.gmra.mxu0 %v304
    %v465 = vpop.f32.mrf.mxu0
    %v466 = vadd.f32 %v327, %v465
    %v467 = vpop.f32.mrf.mxu0
    %468 = vmatprep.mubr.f32.mxu0 0.0
    %469 = vmatmul.mubr.f32.gmra.mxu0 %v305
    %v470 = vpop.f32.mrf.mxu0
    %v471 = vadd.f32 %v327, %v470
    %v472 = vpop.f32.mrf.mxu0
    %473 = vdwg.mxu0
    %v474 = vtanh.pop %v396
    %v475 = vtanh.pop %v401
    %v476 = vtanh.pop %v406
    %v477 = vtanh.pop %v411
    %v478 = vtanh.pop %v416
    %v479 = vtanh.pop %v421
    %v480 = vtanh.pop %v426
    %v481 = vtanh.pop %v431
    %v482 = vtanh.pop %v436
    %v483 = vtanh.pop %v441
    %v484 = vtanh.pop %v446
    %v485 = vtanh.pop %v451
    %v486 = vtanh.pop %v456
    %v487 = vtanh.pop %v461
    %v488 = vtanh.pop %v466
    %v489 = vtanh.pop %v471
    %v490 = vld [vmem:[%s5] sm:$0x1]
    %v492 = vlaneseq
    %v493 = vshrl.u32 %v492, 7
    %v494 = vsub.s32 0, %v493
    %v495 = vrot.slane %v490, %v494
    %v497 = vmul.f32 %v474, %v495
    %v498 = vmul.f32 %v475, %v495
    %v499 = vmul.f32 %v476, %v495
    %v500 = vmul.f32 %v477, %v495
    %v501 = vmul.f32 %v478, %v495
    %v502 = vmul.f32 %v479, %v495
    %v503 = vmul.f32 %v480, %v495
    %v504 = vmul.f32 %v481, %v495
    %v505 = vmul.f32 %v482, %v495
    %v506 = vmul.f32 %v483, %v495
    %v507 = vmul.f32 %v484, %v495
    %v508 = vmul.f32 %v485, %v495
    %v509 = vmul.f32 %v486, %v495
    %v510 = vmul.f32 %v487, %v495
    %v511 = vmul.f32 %v488, %v495
    %v512 = vmul.f32 %v489, %v495
    %513 = vadd.xlane.f32.xlu0 %v497
    %v514 = vpop.xlane.xlu0 %513
    %515 = vadd.xlane.f32.xlu0 %v498
    %v516 = vpop.xlane.xlu0 %515
    %517 = vadd.xlane.f32.xlu0 %v499
    %v518 = vpop.xlane.xlu0 %517
    %519 = vadd.xlane.f32.xlu0 %v500
    %v520 = vpop.xlane.xlu0 %519
    %521 = vadd.xlane.f32.xlu0 %v501
    %v522 = vpop.xlane.xlu0 %521
    %523 = vadd.xlane.f32.xlu0 %v502
    %v524 = vpop.xlane.xlu0 %523
    %525 = vadd.xlane.f32.xlu0 %v503
    %v526 = vpop.xlane.xlu0 %525
    %527 = vadd.xlane.f32.xlu0 %v504
    %v528 = vpop.xlane.xlu0 %527
    %529 = vadd.xlane.f32.xlu0 %v505
    %v530 = vpop.xlane.xlu0 %529
    %531 = vadd.xlane.f32.xlu0 %v506
    %v532 = vpop.xlane.xlu0 %531
    %533 = vadd.xlane.f32.xlu0 %v507
    %v534 = vpop.xlane.xlu0 %533
    %535 = vadd.xlane.f32.xlu0 %v508
    %v536 = vpop.xlane.xlu0 %535
    %537 = vadd.xlane.f32.xlu0 %v509
    %v538 = vpop.xlane.xlu0 %537
    %539 = vadd.xlane.f32.xlu0 %v510
    %v540 = vpop.xlane.xlu0 %539
    %541 = vadd.xlane.f32.xlu0 %v511
    %v542 = vpop.xlane.xlu0 %541
    %543 = vadd.xlane.f32.xlu0 %v512
    %v544 = vpop.xlane.xlu0 %543
    %s545 = sld [smem:[#allocation2]]
    %v546 = vstv %s545
    %v547 = vadd.f32 %v514, %v546
    %v548 = vadd.f32 %v516, %v546
    %v549 = vadd.f32 %v518, %v546
    %v550 = vadd.f32 %v520, %v546
    %v551 = vadd.f32 %v522, %v546
    %v552 = vadd.f32 %v524, %v546
    %v553 = vadd.f32 %v526, %v546
    %v554 = vadd.f32 %v528, %v546
    %v555 = vadd.f32 %v530, %v546
    %v556 = vadd.f32 %v532, %v546
    %v557 = vadd.f32 %v534, %v546
    %v558 = vadd.f32 %v536, %v546
    %v559 = vadd.f32 %v538, %v546
    %v560 = vadd.f32 %v540, %v546
    %v561 = vadd.f32 %v542, %v546
    %v562 = vadd.f32 %v544, %v546
    %v579 = vlaneseq
    %v580 = vand.u32 %v579, 127
    %v581 = vlaneseq
    %v582 = vshrl.u32 %v581, 7
    %v583 = vsub.s32 %v580, %v582
    %v584 = vrot.slane %v547, %v583
    %v585 = vadd.s32 %v580, 4294967288
    %v586 = vlaneseq
    %v587 = vshrl.u32 %v586, 7
    %v588 = vsub.s32 %v585, %v587
    %v589 = vrot.slane %v548, %v588
    %vm590 = vcmask 130112
    %v591 = vsel %vm590, %v589, %v584
    %v592 = vadd.s32 %v580, 4294967280
    %v593 = vlaneseq
    %v594 = vshrl.u32 %v593, 7
    %v595 = vsub.s32 %v592, %v594
    %v596 = vrot.slane %v549, %v595
    %vm597 = vcmask 195712
    %v598 = vsel %vm597, %v596, %v591
    %v599 = vadd.s32 %v580, 4294967272
    %v600 = vlaneseq
    %v601 = vshrl.u32 %v600, 7
    %v602 = vsub.s32 %v599, %v601
    %v603 = vrot.slane %v550, %v602
    %vm604 = vcmask 261312
    %v605 = vsel %vm604, %v603, %v598
    %v606 = vadd.s32 %v580, 4294967264
    %v607 = vlaneseq
    %v608 = vshrl.u32 %v607, 7
    %v609 = vsub.s32 %v606, %v608
    %v610 = vrot.slane %v551, %v609
    %vm611 = vcmask 326912
    %v612 = vsel %vm611, %v610, %v605
    %v613 = vadd.s32 %v580, 4294967256
    %v614 = vlaneseq
    %v615 = vshrl.u32 %v614, 7
    %v616 = vsub.s32 %v613, %v615
    %v617 = vrot.slane %v552, %v616
    %vm618 = vcmask 392512
    %v619 = vsel %vm618, %v617, %v612
    %v620 = vadd.s32 %v580, 4294967248
    %v621 = vlaneseq
    %v622 = vshrl.u32 %v621, 7
    %v623 = vsub.s32 %v620, %v622
    %v624 = vrot.slane %v553, %v623
    %vm625 = vcmask 458112
    %v626 = vsel %vm625, %v624, %v619
    %v627 = vadd.s32 %v580, 4294967240
    %v628 = vlaneseq
    %v629 = vshrl.u32 %v628, 7
    %v630 = vsub.s32 %v627, %v629
    %v631 = vrot.slane %v554, %v630
    %vm632 = vcmask 523712
    %v633 = vsel %vm632, %v631, %v626
    %v634 = vadd.s32 %v580, 4294967232
    %v635 = vlaneseq
    %v636 = vshrl.u32 %v635, 7
    %v637 = vsub.s32 %v634, %v636
    %v638 = vrot.slane %v555, %v637
    %vm639 = vcmask 589312
    %v640 = vsel %vm639, %v638, %v633
    %v641 = vadd.s32 %v580, 4294967224
    %v642 = vlaneseq
    %v643 = vshrl.u32 %v642, 7
    %v644 = vsub.s32 %v641, %v643
    %v645 = vrot.slane %v556, %v644
    %vm646 = vcmask 654912
    %v647 = vsel %vm646, %v645, %v640
    %v648 = vadd.s32 %v580, 4294967216
    %v649 = vlaneseq
    %v650 = vshrl.u32 %v649, 7
    %v651 = vsub.s32 %v648, %v650
    %v652 = vrot.slane %v557, %v651
    %vm653 = vcmask 720512
    %v654 = vsel %vm653, %v652, %v647
    %v655 = vadd.s32 %v580, 4294967208
    %v656 = vlaneseq
    %v657 = vshrl.u32 %v656, 7
    %v658 = vsub.s32 %v655, %v657
    %v659 = vrot.slane %v558, %v658
    %vm660 = vcmask 786112
    %v661 = vsel %vm660, %v659, %v654
    %v662 = vadd.s32 %v580, 4294967200
    %v663 = vlaneseq
    %v664 = vshrl.u32 %v663, 7
    %v665 = vsub.s32 %v662, %v664
    %v666 = vrot.slane %v559, %v665
    %vm667 = vcmask 851712
    %v668 = vsel %vm667, %v666, %v661
    %v669 = vadd.s32 %v580, 4294967192
    %v670 = vlaneseq
    %v671 = vshrl.u32 %v670, 7
    %v672 = vsub.s32 %v669, %v671
    %v673 = vrot.slane %v560, %v672
    %vm674 = vcmask 917312
    %v675 = vsel %vm674, %v673, %v668
    %v676 = vadd.s32 %v580, 4294967184
    %v677 = vlaneseq
    %v678 = vshrl.u32 %v677, 7
    %v679 = vsub.s32 %v676, %v678
    %v680 = vrot.slane %v561, %v679
    %vm681 = vcmask 982912
    %v682 = vsel %vm681, %v680, %v675
    %v683 = vadd.s32 %v580, 4294967176
    %v684 = vlaneseq
    %v685 = vshrl.u32 %v684, 7
    %v686 = vsub.s32 %v683, %v685
    %v687 = vrot.slane %v562, %v686
    %vm688 = vcmask 1048512
    %v689 = vsel %vm688, %v687, %v682
    %691 = vst [vmem:[#allocation9] sm:$0x1] %v689
    // Predicated region
    $region42: #{tpu_custom_call.1} parent=1 // pred_check
      _
    $region43: #{tpu_custom_call.1} parent=1 // pred_check_branch
      %693 = sbr.rel (0) target = $region45
    $region44: #{tpu_custom_call.1} parent=1 // pred_region
      %s695 = ssub.s32 16, 16
      %696 = vsyncadd [#allocation5], %s695
      %s698 = sshll.u32 [#allocation9], 4
      %s699 = int_to_ptr.vmem [resolvable:$true] %s698
      %701 = dma.vmem_to_hbm [thread:$0]  %s699, 16, %s7, [#allocation5]
    $region45: #{tpu_custom_call.1} parent=1 // pred_fallthru
      _
    // Predicated region
    $region46: #{tpu_custom_call.1} parent=1 // pred_check
      _
    $region47: #{tpu_custom_call.1} parent=1 // pred_check_branch
      %703 = sbr.rel (0) target = $region49
    $region48: #{tpu_custom_call.1} parent=1 // pred_region
      %704 = dma.done [#allocation5], 16
    $region49: #{tpu_custom_call.1} parent=1 // pred_fallthru
      _
    %705 = vsyncpa [#allocation4], 1
    %706 = vsyncpa [#allocation7], 1
    %707 = vsyncpa [#allocation5], 1

</llo_original>
